<compile_context>
chip_gen: v6e
topology: v6e:2x2x1
jax: 0.10.0
libtpu: 0.0.40
codegen_flags: <defaults>
</compile_context>

<pallas_src>
import jax
import jax.numpy as jnp
from jax import lax
from jax.experimental import pallas as pl
from jax.experimental.pallas import tpu as pltpu


def _round_up(x, m):
    return (x + m - 1) // m * m


def _onehot_embed_kernel(ids_ref, table_ref, out_ref):
    # ids_ref:   (TOK_BLK, 1) int32 token ids for this block (VMEM)
    # table_ref: (V_pad, H)   embedding table, VMEM-resident (constant index_map)
    # out_ref:   (TOK_BLK, H) gathered embedding rows
    ids = ids_ref[...]                                        # (T, 1)
    tok_blk = ids.shape[0]
    v_pad = table_ref.shape[0]
    cols = lax.broadcasted_iota(jnp.int32, (tok_blk, v_pad), 1)
    onehot = (cols == ids).astype(table_ref.dtype)            # (T, V_pad)
    out_ref[...] = jnp.dot(
        onehot, table_ref[...], preferred_element_type=jnp.float32
    ).astype(out_ref.dtype)


def token_embedding(ids, emb_table, *, tok_blk=256,
                    vmem_table_budget_bytes=12 * 1024 * 1024):
    """ids: int32 [B, S]; emb_table: [V, H] -> [B, S, H] (emb_table dtype)."""
    B, S = ids.shape
    V, H = emb_table.shape
    n_tok = B * S
    itemsize = jnp.dtype(emb_table.dtype).itemsize

    # Pad vocab to a multiple of 128 so the one-hot contraction dim is lane-dense.
    V_pad = _round_up(V, 128)
    table_bytes = V_pad * H * itemsize
    if table_bytes > vmem_table_budget_bytes:
        # TODO(synk): large-vocab path (batched per-row HBM gather with
        # memory_space=pl.ANY + pltpu.make_async_copy) not implemented here.
        raise NotImplementedError(
            "embedding table too large for VMEM-resident one-hot path")
    if V_pad != V:
        emb_table = jnp.pad(emb_table, ((0, V_pad - V), (0, 0)))

    # Token block: multiple of 8 sublanes, capped so tiny inputs don't over-pad.
    TOK_BLK = min(tok_blk, _round_up(n_tok, 8))
    n_tok_pad = _round_up(n_tok, TOK_BLK)
    ids_flat = ids.reshape(-1).astype(jnp.int32)
    if n_tok_pad != n_tok:
        ids_flat = jnp.pad(ids_flat, (0, n_tok_pad - n_tok))   # pad with id 0
    ids_2d = ids_flat.reshape(n_tok_pad, 1)
    n_blocks = n_tok_pad // TOK_BLK

    cost = pl.CostEstimate(
        flops=2 * n_tok_pad * V_pad * H,
        transcendentals=0,
        bytes_accessed=(n_tok_pad * 4                 # ids read
                        + V_pad * H * itemsize        # table read (once)
                        + n_tok_pad * H * itemsize),  # output write
    )

    out_flat = pl.pallas_call(
        _onehot_embed_kernel,
        out_shape=jax.ShapeDtypeStruct((n_tok_pad, H), emb_table.dtype),
        grid_spec=pltpu.PrefetchScalarGridSpec(
            num_scalar_prefetch=0,
            grid=(n_blocks,),
            in_specs=[
                # Per-block token ids.
                pl.BlockSpec((TOK_BLK, 1), lambda i: (i, 0)),
                # Full table, constant index_map -> DMA'd once, VMEM-resident.
                pl.BlockSpec((V_pad, H), lambda i: (0, 0)),
            ],
            out_specs=pl.BlockSpec((TOK_BLK, H), lambda i: (i, 0)),
        ),
        compiler_params=pltpu.CompilerParams(
            # Independent output blocks -> shard token axis across TCs on v7x.
            dimension_semantics=("parallel",),
        ),
        cost_estimate=cost,
    )(ids_2d, emb_table)

    return out_flat[:n_tok].reshape(B, S, H)


if __name__ == "__main__":
    # Small synthetic config (mirrors config.vocab_size / config.hidden_dim).
    vocab_size = 64
    hidden_dim = 128
    batch, seq = 2, 8

    key = jax.random.PRNGKey(0)
    k_emb, k_ids = jax.random.split(key)

    # nn.Embedding default init: N(0, 1).
    emb_table = jax.random.normal(k_emb, (vocab_size, hidden_dim), dtype=jnp.float32)
    ids = jax.random.randint(k_ids, (batch, seq), 0, vocab_size, dtype=jnp.int32)

    out = token_embedding(ids, emb_table)
    out = jax.block_until_ready(out)

    # Reference check against plain JAX gather (same semantics as nn.Embedding).
    ref = jnp.take(emb_table, ids, axis=0)
    assert out.shape == (batch, seq, hidden_dim)
    assert jnp.allclose(out, ref), "mismatch vs reference embedding lookup"

    print("KERNEL_OK")
</pallas_src>

<mosaic_0001>
module attributes {stable_mosaic.version = 11 : i64} {
  func.func @_onehot_embed_kernel(%arg0: i32, %arg1: memref<16x1xi32, #tpu.memory_space<vmem>>, %arg2: memref<128x128xf32, #tpu.memory_space<vmem>>, %arg3: memref<16x128xf32, #tpu.memory_space<vmem>>) attributes {dimension_semantics = [#tpu.dimension_semantics<parallel>], iteration_bounds = array<i64: 1>, scalar_prefetch = 0 : i64, scratch_operands = 0 : i64, tpu.core_type = #tpu.core_type<tc>, window_params = [{transform_indices = @transform_0, window_bounds = array<i64: 16, 1>}, {pipeline_mode = #tpu.pipeline_mode<synchronous>, transform_indices = @transform_1, window_bounds = array<i64: 128, 128>}, {transform_indices = @transform_2, window_bounds = array<i64: 16, 128>}]} {
    %c0 = arith.constant 0 : index
    %c0_0 = arith.constant 0 : index
    %0 = vector.load %arg1[%c0, %c0_0] : memref<16x1xi32, #tpu.memory_space<vmem>>, vector<16x1xi32>
    %1 = tpu.iota {dimensions = array<i32: 1>} : vector<16x128xi32>
    %2 = vector.broadcast %0 : vector<16x1xi32> to vector<16x128xi32>
    %3 = arith.cmpi eq, %1, %2 : vector<16x128xi32>
    %4 = arith.extui %3 : vector<16x128xi1> to vector<16x128xi32>
    %5 = arith.sitofp %4 : vector<16x128xi32> to vector<16x128xf32>
    %c0_1 = arith.constant 0 : index
    %c0_2 = arith.constant 0 : index
    %6 = vector.load %arg2[%c0_1, %c0_2] : memref<128x128xf32, #tpu.memory_space<vmem>>, vector<128x128xf32>
    %cst = arith.constant dense<0.000000e+00> : vector<16x128xf32>
    %7 = tpu.matmul %5, %6, %cst {dimension_numbers = #tpu.dot_dimension_numbers<[1], [0], [0], [1], [0, 0, 1, 1], [], []>} : vector<16x128xf32>, vector<128x128xf32>, vector<16x128xf32> -> vector<16x128xf32>
    %c0_3 = arith.constant 0 : index
    %c0_4 = arith.constant 0 : index
    %8 = vector.load %arg3[%c0_3, %c0_4] : memref<16x128xf32, #tpu.memory_space<vmem>>, vector<16x128xf32>
    tpu.vector_store %arg3[%c0_3, %c0_4], %7 {strides = array<i32>} : memref<16x128xf32, #tpu.memory_space<vmem>>, vector<16x128xf32>,
    return
  }
  func.func @transform_0(%arg0: i32) -> (i32, i32) {
    %c0_i32 = arith.constant 0 : i32
    %c0_i32_0 = arith.constant 0 : i32
    return %arg0, %c0_i32 : i32, i32
  }
  func.func @transform_1(%arg0: i32) -> (i32, i32) {
    %c0_i32 = arith.constant 0 : i32
    %c0_i32_0 = arith.constant 0 : i32
    %c0_i32_1 = arith.constant 0 : i32
    return %c0_i32, %c0_i32_0 : i32, i32
  }
  func.func @transform_2(%arg0: i32) -> (i32, i32) {
    %c0_i32 = arith.constant 0 : i32
    %c0_i32_0 = arith.constant 0 : i32
    return %arg0, %c0_i32 : i32, i32
  }
}

</mosaic_0001>

<llo_original>
// kernel: tpu_custom_call.1
$region0: #{tpu_custom_call.1}
  #allocation0 [shape = 'u32[]', space=smem, size = 0x4, offset = 0x4, fixed_abs, tag = 'smem constant byte address 0x4 - core index']
  #allocation1 [shape = 'u32[144,128]{1,0:T(1,128)}', space=vmem, size = 0x12000, scoped, tag = 'internal scratch']
  %s0 = inlined_call_operand.vmem [shape: s32[16,1], index: 0, kind: input, shape index: {}]
  %s1 = inlined_call_operand.hbm [shape: f32[128,128], index: 1, kind: input, shape index: {}]
  %s2 = inlined_call_operand.hbm [shape: f32[16,128], index: 2, kind: output, shape index: {}]
  %s3 = sld [smem:[#allocation0]]
  $region22: #{tpu_custom_call.1} parent=0
    _
  %s5 = ssub.s32 1, %s3
  %s6 = scalar_select 0, %s5, %s3
  $region1: #{tpu_custom_call.1} parent=0
    #allocation2 [shape = 'u8[65536]{0}', space=vmem, size = 0x10000, scoped, tag = 'input window, operand 1, single buffered']
    #allocation3 [shape = 's32[1]{0}', space=sflag, size = 0x4, scoped, tag = 'scoped memory for tpu_custom_call.1']
    #allocation4 [shape = 's32[1]{0}', space=sflag, size = 0x4, scoped, tag = 'scoped memory for tpu_custom_call.1']
    #allocation5 [shape = 'u8[8192]{0}', space=vmem, size = 0x2000, scoped, tag = 'output window, operand 0, single buffered']
    %7 = vsyncpa [#allocation3], 0
    %8 = vsyncpa [#allocation4], 0
    // Predicated region
    $region2: #{tpu_custom_call.1} parent=1 // pred_check
      _
    $region3: #{tpu_custom_call.1} parent=1 // pred_check_branch
      %10 = sbr.rel (0) target = $region5
    $region4: #{tpu_custom_call.1} parent=1 // pred_region
      _
    $region5: #{tpu_custom_call.1} parent=1 // pred_fallthru
      _
    // Predicated region
    $region6: #{tpu_custom_call.1} parent=1 // pred_check
      _
    $region7: #{tpu_custom_call.1} parent=1 // pred_check_branch
      %12 = sbr.rel (0) target = $region9
    $region8: #{tpu_custom_call.1} parent=1 // pred_region
      %s14 = ssub.s32 2048, 2048
      %15 = vsyncadd [#allocation3], %s14
      %s16 = sshll.u32 [#allocation2], 4
      %s17 = int_to_ptr.vmem [resolvable:$true] %s16
      %22 = dma.hbm_to_vmem [thread:$0]  %s1, 2048, %s17, [#allocation3], 128, 128, 8
    $region9: #{tpu_custom_call.1} parent=1 // pred_fallthru
      _
    // Predicated region
    $region10: #{tpu_custom_call.1} parent=1 // pred_check
      _
    $region11: #{tpu_custom_call.1} parent=1 // pred_check_branch
      %24 = sbr.rel (0) target = $region13
    $region12: #{tpu_custom_call.1} parent=1 // pred_region
      %25 = dma.done [#allocation3], 2048
    $region13: #{tpu_custom_call.1} parent=1 // pred_fallthru
      _
    %v26 = vld [vmem:[%s0] sm:$0xff]
    %v27 = vld [vmem:[%s0 + $0x8] sm:$0xff]
    %v28 = vlaneseq
    %v29 = vand.u32 %v28, 127
    %30 = vset.pattern.permute.xlu0 0
    %31 = vperm.xlu0 %30, %v26
    %v32 = vpop.permute.xlu0 %31
    %33 = vset.pattern.permute.xlu0 0
    %34 = vperm.xlu0 %33, %v27
    %v35 = vpop.permute.xlu0 %34
    %vm36 = vcmp.eq.s32.totalorder %v29, %v32
    %vm37 = vcmp.eq.s32.totalorder %v29, %v35
    %v38 = vsel %vm36, 1, 0
    %v39 = vsel %vm37, 1, 0
    %v40 = vcvt.s32.f32 %v38
    %v41 = vcvt.s32.f32 %v39
    %v42 = vld [vmem:[#allocation2] sm:$0xff]
    %v43 = vld [vmem:[#allocation2 + $0x8] sm:$0xff]
    %v44 = vld [vmem:[#allocation2 + $0x10] sm:$0xff]
    %v45 = vld [vmem:[#allocation2 + $0x18] sm:$0xff]
    %v46 = vld [vmem:[#allocation2 + $0x20] sm:$0xff]
    %v47 = vld [vmem:[#allocation2 + $0x28] sm:$0xff]
    %v48 = vld [vmem:[#allocation2 + $0x30] sm:$0xff]
    %v49 = vld [vmem:[#allocation2 + $0x38] sm:$0xff]
    %v50 = vld [vmem:[#allocation2 + $0x40] sm:$0xff]
    %v51 = vld [vmem:[#allocation2 + $0x48] sm:$0xff]
    %v52 = vld [vmem:[#allocation2 + $0x50] sm:$0xff]
    %v53 = vld [vmem:[#allocation2 + $0x58] sm:$0xff]
    %v54 = vld [vmem:[#allocation2 + $0x60] sm:$0xff]
    %v55 = vld [vmem:[#allocation2 + $0x68] sm:$0xff]
    %v56 = vld [vmem:[#allocation2 + $0x70] sm:$0xff]
    %v57 = vld [vmem:[#allocation2 + $0x78] sm:$0xff]
    %58 = vmatprep.subr.mxu0 0.0
    %59 = vmatpush1.msra.mxu0 %v57
    %60 = vmatprep.subr.mxu0 0.0
    %61 = vmatpush1.msra.mxu0 %v56
    %62 = vmatprep.subr.mxu0 0.0
    %63 = vmatpush1.msra.mxu0 %v55
    %64 = vmatprep.subr.mxu0 0.0
    %65 = vmatpush1.msra.mxu0 %v54
    %66 = vmatprep.subr.mxu0 0.0
    %67 = vmatpush1.msra.mxu0 %v53
    %68 = vmatprep.subr.mxu0 0.0
    %69 = vmatpush1.msra.mxu0 %v52
    %70 = vmatprep.subr.mxu0 0.0
    %71 = vmatpush1.msra.mxu0 %v51
    %72 = vmatprep.subr.mxu0 0.0
    %73 = vmatpush1.msra.mxu0 %v50
    %74 = vmatprep.subr.mxu0 0.0
    %75 = vmatpush1.msra.mxu0 %v49
    %76 = vmatprep.subr.mxu0 0.0
    %77 = vmatpush1.msra.mxu0 %v48
    %78 = vmatprep.subr.mxu0 0.0
    %79 = vmatpush1.msra.mxu0 %v47
    %80 = vmatprep.subr.mxu0 0.0
    %81 = vmatpush1.msra.mxu0 %v46
    %82 = vmatprep.subr.mxu0 0.0
    %83 = vmatpush1.msra.mxu0 %v45
    %84 = vmatprep.subr.mxu0 0.0
    %85 = vmatpush1.msra.mxu0 %v44
    %86 = vmatprep.subr.mxu0 0.0
    %87 = vmatpush1.msra.mxu0 %v43
    %88 = vmatprep.subr.mxu0 0.0
    %89 = vmatpush1.msra.mxu0 %v42
    %90 = vmatprep.subr.mxu0 0.0
    %91 = vmatpush2.msra.mxu0 0.0
    %92 = vmatprep.subr.mxu0 0.0
    %93 = vmatpush2.msra.mxu0 0.0
    %94 = vmatprep.subr.mxu0 0.0
    %95 = vmatpush2.msra.mxu0 0.0
    %96 = vmatprep.subr.mxu0 0.0
    %97 = vmatpush2.msra.mxu0 0.0
    %98 = vmatprep.subr.mxu0 0.0
    %99 = vmatpush2.msra.mxu0 0.0
    %100 = vmatprep.subr.mxu0 0.0
    %101 = vmatpush2.msra.mxu0 0.0
    %102 = vmatprep.subr.mxu0 0.0
    %103 = vmatpush2.msra.mxu0 0.0
    %104 = vmatprep.subr.mxu0 0.0
    %105 = vmatpush2.msra.mxu0 0.0
    %106 = vmatprep.subr.mxu0 0.0
    %107 = vmatpush2.msra.mxu0 0.0
    %108 = vmatprep.subr.mxu0 0.0
    %109 = vmatpush2.msra.mxu0 0.0
    %110 = vmatprep.subr.mxu0 0.0
    %111 = vmatpush2.msra.mxu0 0.0
    %112 = vmatprep.subr.mxu0 0.0
    %113 = vmatpush2.msra.mxu0 0.0
    %114 = vmatprep.subr.mxu0 0.0
    %115 = vmatpush2.msra.mxu0 0.0
    %116 = vmatprep.subr.mxu0 0.0
    %117 = vmatpush2.msra.mxu0 0.0
    %118 = vmatprep.subr.mxu0 0.0
    %119 = vmatpush2.msra.mxu0 0.0
    %120 = vmatprep.subr.mxu0 0.0
    %121 = vmatpush2.msra.mxu0 0.0
    %122 = vmatprep.mubr.f32.mxu0 0.0
    %123 = vmatmul.mubr.f32.gmra.mxu0 %v40
    %v124 = vpop.f32.mrf.mxu0
    %v125 = vadd.f32 0.0, %v124
    %v126 = vpop.f32.mrf.mxu0
    %127 = vmatprep.mubr.f32.mxu0 0.0
    %128 = vmatmul.mubr.f32.gmra.mxu0 %v41
    %v129 = vpop.f32.mrf.mxu0
    %v130 = vadd.f32 0.0, %v129
    %v131 = vpop.f32.mrf.mxu0
    %132 = vdwg.mxu0
    %133 = vst [vmem:[#allocation5] sm:$0xff] %v125
    %134 = vst [vmem:[#allocation5 + $0x8] sm:$0xff] %v130
    // Predicated region
    $region14: #{tpu_custom_call.1} parent=1 // pred_check
      _
    $region15: #{tpu_custom_call.1} parent=1 // pred_check_branch
      %136 = sbr.rel (0) target = $region17
    $region16: #{tpu_custom_call.1} parent=1 // pred_region
      %s138 = ssub.s32 256, 256
      %139 = vsyncadd [#allocation4], %s138
      %s140 = sshll.u32 [#allocation5], 4
      %s141 = int_to_ptr.vmem [resolvable:$true] %s140
      %146 = dma.vmem_to_hbm [thread:$0]  %s141, 256, %s2, [#allocation4], 128, 128, 8
    $region17: #{tpu_custom_call.1} parent=1 // pred_fallthru
      _
    // Predicated region
    $region18: #{tpu_custom_call.1} parent=1 // pred_check
      _
    $region19: #{tpu_custom_call.1} parent=1 // pred_check_branch
      %148 = sbr.rel (0) target = $region21
    $region20: #{tpu_custom_call.1} parent=1 // pred_region
      %149 = dma.done [#allocation4], 256
    $region21: #{tpu_custom_call.1} parent=1 // pred_fallthru
      _
    %150 = vsyncpa [#allocation3], 1
    %151 = vsyncpa [#allocation4], 1

</llo_original>
